<compile_context>
chip_gen: v5e
topology: v5e:2x2
jax: 0.10.0
libtpu: 0.0.40
codegen_flags: <defaults>
</compile_context>

<pallas_src>
import functools

import jax
import jax.numpy as jnp
from jax.experimental import pallas as pl
from jax.experimental.pallas import tpu as pltpu


def _round_up(n, m):
    return ((n + m - 1) // m) * m


def _particle_mapping_kernel(x_ref, w1_ref, b1_ref, w2_ref, b2_ref, w3_ref, b3_ref,
                             o_ref, *, particles, input_size):
    # x_ref: (TB, P*D)  one batch tile, particles flattened into the lane dim
    # w*_ref: (in, out) padded to lane multiples of 128; b*_ref: (1, out)
    # o_ref: (TB, OUT_PAD) lane-dense output tile
    w1 = w1_ref[...]
    b1 = b1_ref[...]
    w2 = w2_ref[...]
    b2 = b2_ref[...]
    w3 = w3_ref[...]  # carries the (input_size / particles) pooling scale
    b3 = b3_ref[...]  # carries the full input_size scale (bias summed over particles)

    xt = jnp.nan_to_num(x_ref[...])  # whole-tile nan_to_num, done once

    acc = jnp.zeros(o_ref.shape, jnp.float32)
    # P is small (total_features // input_size); static unroll keeps everything 2-D
    # and MXU-friendly (M = TB per matmul).
    # TODO(synk): for very large particle counts, switch to lax.fori_loop(unroll=k)
    # over a (TB*P, D)-flattened layout to bound code size.
    for p in range(particles):
        xp = xt[:, p * input_size:(p + 1) * input_size]                     # (TB, D)
        h = jnp.dot(xp, w1, preferred_element_type=jnp.float32) + b1
        h = jnp.maximum(h, 0.0)                                             # ReLU
        h = jnp.dot(h, w2, preferred_element_type=jnp.float32) + b2
        h = jnp.maximum(h, 0.0)                                             # ReLU
        acc = acc + jnp.dot(h, w3, preferred_element_type=jnp.float32)
    # bias of the last layer, already summed/scaled over particles, added once
    o_ref[...] = acc + b3


def particle_mapping_forward(x, params, input_size, total_features, *, block_b=512):
    """x: (batch, particles, input_size) float32. Returns (batch, output_dimension)."""
    B, P, D = x.shape
    assert D == input_size and P * D == total_features

    w1, b1, w2, b2, w3, b3 = params
    h1, h2, out_dim = w1.shape[1], w2.shape[1], w3.shape[1]

    # Pad feature dims to lane multiples of 128 (zero padding is exact through ReLU).
    H1, H2, OUT = _round_up(h1, 128), _round_up(h2, 128), _round_up(out_dim, 128)
    # AvgPool2d((P,1)) * input_size == sum_p(...) * (input_size / P)
    w_scale = float(input_size) / float(P)   # per-particle scale folded into w3
    b_scale = float(input_size)              # bias summed over P particles -> * input_size

    w1p = jnp.zeros((D, H1), jnp.float32).at[:, :h1].set(w1)
    b1p = jnp.zeros((1, H1), jnp.float32).at[:, :h1].set(b1)
    w2p = jnp.zeros((H1, H2), jnp.float32).at[:h1, :h2].set(w2)
    b2p = jnp.zeros((1, H2), jnp.float32).at[:, :h2].set(b2)
    w3p = jnp.zeros((H2, OUT), jnp.float32).at[:h2, :out_dim].set(w3 * w_scale)
    b3p = jnp.zeros((1, OUT), jnp.float32).at[:, :out_dim].set(b3 * b_scale)

    # Flatten particles into the lane dimension: (B, P*D).
    x2 = x.reshape(B, P * D).astype(jnp.float32)

    # Batch tile (second-to-last block dim must be a multiple of 8).
    TB = min(block_b, _round_up(B, 8))
    Bp = _round_up(B, TB)
    if Bp != B:
        x2 = jnp.pad(x2, ((0, Bp - B), (0, 0)))

    kern = functools.partial(_particle_mapping_kernel, particles=P, input_size=D)
    const2 = lambda i: (0, 0)  # weights/biases: block-invariant -> DMA'd once, resident

    out = pl.pallas_call(
        kern,
        out_shape=jax.ShapeDtypeStruct((Bp, OUT), jnp.float32),
        grid_spec=pltpu.PrefetchScalarGridSpec(
            num_scalar_prefetch=0,
            grid=(Bp // TB,),
            in_specs=[
                pl.BlockSpec((TB, P * D), lambda i: (i, 0)),
                pl.BlockSpec((D, H1), const2),
                pl.BlockSpec((1, H1), const2),
                pl.BlockSpec((H1, H2), const2),
                pl.BlockSpec((1, H2), const2),
                pl.BlockSpec((H2, OUT), const2),
                pl.BlockSpec((1, OUT), const2),
            ],
            out_specs=pl.BlockSpec((TB, OUT), lambda i: (i, 0)),
        ),
        compiler_params=pltpu.CompilerParams(
            dimension_semantics=("parallel",),       # shard batch tiles across TCs (v7x)
            vmem_limit_bytes=32 * 1024 * 1024,       # safe on v5e/v6e/v7x; kernel needs ~1-2 MiB
        ),
    )(x2, w1p, b1p, w2p, b2p, w3p, b3p)

    return out[:B, :out_dim]


def _init_linear(key, fan_in, fan_out):
    # matches torch.nn.Linear default init: U(-1/sqrt(fan_in), 1/sqrt(fan_in))
    k = 1.0 / (fan_in ** 0.5)
    kw, kb = jax.random.split(key)
    w = jax.random.uniform(kw, (fan_in, fan_out), jnp.float32, -k, k)
    b = jax.random.uniform(kb, (1, fan_out), jnp.float32, -k, k)
    return w, b


if __name__ == "__main__":
    # ParticleMapping(input_size=4, total_features=8, output_dimension=8)
    # -> default hidden_layer_dimensions=[100]
    # -> stack = Linear(4,100) ReLU Linear(100,100) ReLU Linear(100,8)
    input_size, total_features, output_dimension = 4, 8, 8
    hidden = 100
    P = total_features // input_size
    batch = 2

    key = jax.random.PRNGKey(0)
    k1, k2, k3, kx = jax.random.split(key, 4)
    w1, b1 = _init_linear(k1, input_size, hidden)
    w2, b2 = _init_linear(k2, hidden, hidden)
    w3, b3 = _init_linear(k3, hidden, output_dimension)
    params = (w1, b1, w2, b2, w3, b3)

    x = jax.random.normal(kx, (batch, P, input_size), jnp.float32)
    x = x.at[0, 1].set(jnp.nan)  # a "missing" particle, exercises nan_to_num

    out = particle_mapping_forward(x, params, input_size, total_features)
    out = jax.block_until_ready(out)

    # pure-JAX reference of the PyTorch forward
    def ref(xi):
        h = jnp.nan_to_num(xi)
        h = jnp.maximum(h @ w1 + b1, 0.0)
        h = jnp.maximum(h @ w2 + b2, 0.0)
        h = h @ w3 + b3                          # (B, P, out)
        return jnp.mean(h, axis=1) * input_size  # AvgPool2d((P,1)) * input_size, squeeze

    assert out.shape == (batch, output_dimension)
    assert jnp.allclose(out, ref(x), atol=1e-4, rtol=1e-4)
    print("KERNEL_OK")
</pallas_src>

<mosaic_0001>
module attributes {stable_mosaic.version = 11 : i64} {
  func.func @_particle_mapping_kernel(%arg0: i32, %arg1: memref<8x8xf32, #tpu.memory_space<vmem>>, %arg2: memref<4x128xf32, #tpu.memory_space<vmem>>, %arg3: memref<1x128xf32, #tpu.memory_space<vmem>>, %arg4: memref<128x128xf32, #tpu.memory_space<vmem>>, %arg5: memref<1x128xf32, #tpu.memory_space<vmem>>, %arg6: memref<128x128xf32, #tpu.memory_space<vmem>>, %arg7: memref<1x128xf32, #tpu.memory_space<vmem>>, %arg8: memref<8x128xf32, #tpu.memory_space<vmem>>) attributes {dimension_semantics = [#tpu.dimension_semantics<parallel>], iteration_bounds = array<i64: 1>, scalar_prefetch = 0 : i64, scratch_operands = 0 : i64, tpu.core_type = #tpu.core_type<tc>, window_params = [{transform_indices = @transform_0, window_bounds = array<i64: 8, 8>}, {pipeline_mode = #tpu.pipeline_mode<synchronous>, transform_indices = @transform_1, window_bounds = array<i64: 4, 128>}, {pipeline_mode = #tpu.pipeline_mode<synchronous>, transform_indices = @transform_2, window_bounds = array<i64: 1, 128>}, {pipeline_mode = #tpu.pipeline_mode<synchronous>, transform_indices = @transform_3, window_bounds = array<i64: 128, 128>}, {pipeline_mode = #tpu.pipeline_mode<synchronous>, transform_indices = @transform_4, window_bounds = array<i64: 1, 128>}, {pipeline_mode = #tpu.pipeline_mode<synchronous>, transform_indices = @transform_5, window_bounds = array<i64: 128, 128>}, {pipeline_mode = #tpu.pipeline_mode<synchronous>, transform_indices = @transform_6, window_bounds = array<i64: 1, 128>}, {transform_indices = @transform_7, window_bounds = array<i64: 8, 128>}]} {
    %c0 = arith.constant 0 : index
    %c0_0 = arith.constant 0 : index
    %0 = vector.load %arg2[%c0, %c0_0] : memref<4x128xf32, #tpu.memory_space<vmem>>, vector<4x128xf32>
    %c0_1 = arith.constant 0 : index
    %c0_2 = arith.constant 0 : index
    %1 = vector.load %arg3[%c0_1, %c0_2] : memref<1x128xf32, #tpu.memory_space<vmem>>, vector<1x128xf32>
    %c0_3 = arith.constant 0 : index
    %c0_4 = arith.constant 0 : index
    %2 = vector.load %arg4[%c0_3, %c0_4] : memref<128x128xf32, #tpu.memory_space<vmem>>, vector<128x128xf32>
    %c0_5 = arith.constant 0 : index
    %c0_6 = arith.constant 0 : index
    %3 = vector.load %arg5[%c0_5, %c0_6] : memref<1x128xf32, #tpu.memory_space<vmem>>, vector<1x128xf32>
    %c0_7 = arith.constant 0 : index
    %c0_8 = arith.constant 0 : index
    %4 = vector.load %arg6[%c0_7, %c0_8] : memref<128x128xf32, #tpu.memory_space<vmem>>, vector<128x128xf32>
    %c0_9 = arith.constant 0 : index
    %c0_10 = arith.constant 0 : index
    %5 = vector.load %arg7[%c0_9, %c0_10] : memref<1x128xf32, #tpu.memory_space<vmem>>, vector<1x128xf32>
    %c0_11 = arith.constant 0 : index
    %c0_12 = arith.constant 0 : index
    %6 = vector.load %arg1[%c0_11, %c0_12] : memref<8x8xf32, #tpu.memory_space<vmem>>, vector<8x8xf32>
    %7 = arith.cmpf one, %6, %6 : vector<8x8xf32>
    %cst = arith.constant 0.000000e+00 : f32
    %8 = vector.broadcast %cst : f32 to vector<8x8xf32>
    %9 = arith.select %7, %8, %6 : vector<8x8xi1>, vector<8x8xf32>
    %cst_13 = arith.constant 0x7F800000 : f32
    %10 = vector.broadcast %cst_13 : f32 to vector<8x8xf32>
    %11 = arith.cmpf oeq, %9, %10 : vector<8x8xf32>
    %cst_14 = arith.constant 3.40282347E+38 : f32
    %12 = vector.broadcast %cst_14 : f32 to vector<8x8xf32>
    %13 = arith.select %11, %12, %9 : vector<8x8xi1>, vector<8x8xf32>
    %cst_15 = arith.constant 0xFF800000 : f32
    %14 = vector.broadcast %cst_15 : f32 to vector<8x8xf32>
    %15 = arith.cmpf oeq, %13, %14 : vector<8x8xf32>
    %cst_16 = arith.constant -3.40282347E+38 : f32
    %16 = vector.broadcast %cst_16 : f32 to vector<8x8xf32>
    %17 = arith.select %15, %16, %13 : vector<8x8xi1>, vector<8x8xf32>
    %cst_17 = arith.constant 0.000000e+00 : f32
    %18 = vector.broadcast %cst_17 : f32 to vector<8x128xf32>
    %19 = vector.extract_strided_slice %17 {offsets = [0, 0], sizes = [8, 4], strides = [1, 1]} : vector<8x8xf32> to vector<8x4xf32>
    %cst_18 = arith.constant dense<0.000000e+00> : vector<8x128xf32>
    %20 = tpu.matmul %19, %0, %cst_18 {dimension_numbers = #tpu.dot_dimension_numbers<[1], [0], [0], [1], [0, 0, 1, 1], [], []>} : vector<8x4xf32>, vector<4x128xf32>, vector<8x128xf32> -> vector<8x128xf32>
    %21 = vector.broadcast %1 : vector<1x128xf32> to vector<8x128xf32>
    %22 = arith.addf %20, %21 : vector<8x128xf32>
    %cst_19 = arith.constant 0.000000e+00 : f32
    %23 = vector.broadcast %cst_19 : f32 to vector<8x128xf32>
    %24 = arith.maximumf %22, %23 : vector<8x128xf32>
    %cst_20 = arith.constant dense<0.000000e+00> : vector<8x128xf32>
    %25 = tpu.matmul %24, %2, %cst_20 {dimension_numbers = #tpu.dot_dimension_numbers<[1], [0], [0], [1], [0, 0, 1, 1], [], []>} : vector<8x128xf32>, vector<128x128xf32>, vector<8x128xf32> -> vector<8x128xf32>
    %26 = vector.broadcast %3 : vector<1x128xf32> to vector<8x128xf32>
    %27 = arith.addf %25, %26 : vector<8x128xf32>
    %cst_21 = arith.constant 0.000000e+00 : f32
    %28 = vector.broadcast %cst_21 : f32 to vector<8x128xf32>
    %29 = arith.maximumf %27, %28 : vector<8x128xf32>
    %cst_22 = arith.constant dense<0.000000e+00> : vector<8x128xf32>
    %30 = tpu.matmul %29, %4, %cst_22 {dimension_numbers = #tpu.dot_dimension_numbers<[1], [0], [0], [1], [0, 0, 1, 1], [], []>} : vector<8x128xf32>, vector<128x128xf32>, vector<8x128xf32> -> vector<8x128xf32>
    %31 = arith.addf %18, %30 : vector<8x128xf32>
    %32 = vector.extract_strided_slice %17 {offsets = [0, 4], sizes = [8, 4], strides = [1, 1]} : vector<8x8xf32> to vector<8x4xf32>
    %cst_23 = arith.constant dense<0.000000e+00> : vector<8x128xf32>
    %33 = tpu.matmul %32, %0, %cst_23 {dimension_numbers = #tpu.dot_dimension_numbers<[1], [0], [0], [1], [0, 0, 1, 1], [], []>} : vector<8x4xf32>, vector<4x128xf32>, vector<8x128xf32> -> vector<8x128xf32>
    %34 = vector.broadcast %1 : vector<1x128xf32> to vector<8x128xf32>
    %35 = arith.addf %33, %34 : vector<8x128xf32>
    %cst_24 = arith.constant 0.000000e+00 : f32
    %36 = vector.broadcast %cst_24 : f32 to vector<8x128xf32>
    %37 = arith.maximumf %35, %36 : vector<8x128xf32>
    %cst_25 = arith.constant dense<0.000000e+00> : vector<8x128xf32>
    %38 = tpu.matmul %37, %2, %cst_25 {dimension_numbers = #tpu.dot_dimension_numbers<[1], [0], [0], [1], [0, 0, 1, 1], [], []>} : vector<8x128xf32>, vector<128x128xf32>, vector<8x128xf32> -> vector<8x128xf32>
    %39 = vector.broadcast %3 : vector<1x128xf32> to vector<8x128xf32>
    %40 = arith.addf %38, %39 : vector<8x128xf32>
    %cst_26 = arith.constant 0.000000e+00 : f32
    %41 = vector.broadcast %cst_26 : f32 to vector<8x128xf32>
    %42 = arith.maximumf %40, %41 : vector<8x128xf32>
    %cst_27 = arith.constant dense<0.000000e+00> : vector<8x128xf32>
    %43 = tpu.matmul %42, %4, %cst_27 {dimension_numbers = #tpu.dot_dimension_numbers<[1], [0], [0], [1], [0, 0, 1, 1], [], []>} : vector<8x128xf32>, vector<128x128xf32>, vector<8x128xf32> -> vector<8x128xf32>
    %44 = arith.addf %31, %43 : vector<8x128xf32>
    %45 = vector.broadcast %5 : vector<1x128xf32> to vector<8x128xf32>
    %46 = arith.addf %44, %45 : vector<8x128xf32>
    %c0_28 = arith.constant 0 : index
    %c0_29 = arith.constant 0 : index
    %47 = vector.load %arg8[%c0_28, %c0_29] : memref<8x128xf32, #tpu.memory_space<vmem>>, vector<8x128xf32>
    tpu.vector_store %arg8[%c0_28, %c0_29], %46 {strides = array<i32>} : memref<8x128xf32, #tpu.memory_space<vmem>>, vector<8x128xf32>,
    return
  }
  func.func @transform_0(%arg0: i32) -> (i32, i32) {
    %c0_i32 = arith.constant 0 : i32
    %c0_i32_0 = arith.constant 0 : i32
    return %arg0, %c0_i32 : i32, i32
  }
  func.func @transform_1(%arg0: i32) -> (i32, i32) {
    %c0_i32 = arith.constant 0 : i32
    %c0_i32_0 = arith.constant 0 : i32
    %c0_i32_1 = arith.constant 0 : i32
    return %c0_i32, %c0_i32_0 : i32, i32
  }
  func.func @transform_2(%arg0: i32) -> (i32, i32) {
    %c0_i32 = arith.constant 0 : i32
    %c0_i32_0 = arith.constant 0 : i32
    %c0_i32_1 = arith.constant 0 : i32
    return %c0_i32, %c0_i32_0 : i32, i32
  }
  func.func @transform_3(%arg0: i32) -> (i32, i32) {
    %c0_i32 = arith.constant 0 : i32
    %c0_i32_0 = arith.constant 0 : i32
    %c0_i32_1 = arith.constant 0 : i32
    return %c0_i32, %c0_i32_0 : i32, i32
  }
  func.func @transform_4(%arg0: i32) -> (i32, i32) {
    %c0_i32 = arith.constant 0 : i32
    %c0_i32_0 = arith.constant 0 : i32
    %c0_i32_1 = arith.constant 0 : i32
    return %c0_i32, %c0_i32_0 : i32, i32
  }
  func.func @transform_5(%arg0: i32) -> (i32, i32) {
    %c0_i32 = arith.constant 0 : i32
    %c0_i32_0 = arith.constant 0 : i32
    %c0_i32_1 = arith.constant 0 : i32
    return %c0_i32, %c0_i32_0 : i32, i32
  }
  func.func @transform_6(%arg0: i32) -> (i32, i32) {
    %c0_i32 = arith.constant 0 : i32
    %c0_i32_0 = arith.constant 0 : i32
    %c0_i32_1 = arith.constant 0 : i32
    return %c0_i32, %c0_i32_0 : i32, i32
  }
  func.func @transform_7(%arg0: i32) -> (i32, i32) {
    %c0_i32 = arith.constant 0 : i32
    %c0_i32_0 = arith.constant 0 : i32
    return %arg0, %c0_i32 : i32, i32
  }
}

</mosaic_0001>

<llo_original>
// kernel: tpu_custom_call.1
$region0: #{tpu_custom_call.1}
  #allocation0 [shape = 'u32[]', space=smem, size = 0x4, offset = 0x4, fixed_abs, tag = 'smem constant byte address 0x4 - core index']
  #allocation1 [shape = 'u32[72,128]{1,0:T(1,128)}', space=vmem, size = 0x9000, scoped, tag = 'internal scratch']
  %s0 = inlined_call_operand.hbm [shape: f32[8,8], index: 0, kind: input, shape index: {}]
  %s1 = inlined_call_operand.hbm [shape: f32[4,128], index: 1, kind: input, shape index: {}]
  %s2 = inlined_call_operand.vmem [shape: f32[1,128], index: 2, kind: input, shape index: {}]
  %s3 = inlined_call_operand.hbm [shape: f32[128,128], index: 3, kind: input, shape index: {}]
  %s4 = inlined_call_operand.vmem [shape: f32[1,128], index: 4, kind: input, shape index: {}]
  %s5 = inlined_call_operand.hbm [shape: f32[128,128], index: 5, kind: input, shape index: {}]
  %s6 = inlined_call_operand.vmem [shape: f32[1,128], index: 6, kind: input, shape index: {}]
  %s7 = inlined_call_operand.hbm [shape: f32[8,128], index: 7, kind: output, shape index: {}]
  %s8 = sld [smem:[#allocation0]]
  $region54: #{tpu_custom_call.1} parent=0
    _
  %s10 = ssub.s32 1, %s8
  %s11 = scalar_select 0, %s10, %s8
  $region1: #{tpu_custom_call.1} parent=0
    #allocation2 [shape = 'u8[4096]{0}', space=vmem, size = 0x1000, scoped, tag = 'input window, operand 0, single buffered']
    #allocation3 [shape = 's32[1]{0}', space=sflag, size = 0x4, scoped, tag = 'scoped memory for tpu_custom_call.1']
    #allocation4 [shape = 's32[1]{0}', space=sflag, size = 0x4, scoped, tag = 'scoped memory for tpu_custom_call.1']
    #allocation5 [shape = 'u8[2048]{0}', space=vmem, size = 0x800, scoped, tag = 'input window, operand 1, single buffered']
    #allocation6 [shape = 's32[1]{0}', space=sflag, size = 0x4, scoped, tag = 'scoped memory for tpu_custom_call.1']
    #allocation7 [shape = 'u8[65536]{0}', space=vmem, size = 0x10000, scoped, tag = 'input window, operand 3, single buffered']
    #allocation8 [shape = 'u8[65536]{0}', space=vmem, size = 0x10000, scoped, tag = 'input window, operand 5, single buffered']
    #allocation9 [shape = 's32[1]{0}', space=sflag, size = 0x4, scoped, tag = 'scoped memory for tpu_custom_call.1']
    #allocation10 [shape = 'u8[4096]{0}', space=vmem, size = 0x1000, scoped, tag = 'output window, operand 0, single buffered']
    %12 = vsyncpa [#allocation3], 0
    %13 = vsyncpa [#allocation6], 0
    %14 = vsyncpa [#allocation9], 0
    %15 = vsyncpa [#allocation4], 0
    // Predicated region
    $region2: #{tpu_custom_call.1} parent=1 // pred_check
      _
    $region3: #{tpu_custom_call.1} parent=1 // pred_check_branch
      %17 = sbr.rel (0) target = $region5
    $region4: #{tpu_custom_call.1} parent=1 // pred_region
      %19 = vsyncadd [#allocation3], 0
      %s21 = sshll.u32 %s0, 4
      %s22 = int_to_ptr.hbm [resolvable:$true] %s21
      %s23 = sshll.u32 [#allocation2], 4
      %s24 = int_to_ptr.vmem [resolvable:$true] %s23
      %26 = dma.hbm_to_vmem [thread:$0]  %s22, 128, %s24, [#allocation3]
    $region5: #{tpu_custom_call.1} parent=1 // pred_fallthru
      _
    // Predicated region
    $region6: #{tpu_custom_call.1} parent=1 // pred_check
      _
    $region7: #{tpu_custom_call.1} parent=1 // pred_check_branch
      %28 = sbr.rel (0) target = $region9
    $region8: #{tpu_custom_call.1} parent=1 // pred_region
      %30 = vsyncadd [#allocation6], 0
      %s32 = sshll.u32 %s1, 4
      %s33 = int_to_ptr.hbm [resolvable:$true] %s32
      %s34 = sshll.u32 [#allocation5], 4
      %s35 = int_to_ptr.vmem [resolvable:$true] %s34
      %37 = dma.hbm_to_vmem [thread:$0]  %s33, 64, %s35, [#allocation6]
    $region9: #{tpu_custom_call.1} parent=1 // pred_fallthru
      _
    // Predicated region
    $region10: #{tpu_custom_call.1} parent=1 // pred_check
      _
    $region11: #{tpu_custom_call.1} parent=1 // pred_check_branch
      %39 = sbr.rel (0) target = $region13
    $region12: #{tpu_custom_call.1} parent=1 // pred_region
      _
    $region13: #{tpu_custom_call.1} parent=1 // pred_fallthru
      _
    // Predicated region
    $region14: #{tpu_custom_call.1} parent=1 // pred_check
      _
    $region15: #{tpu_custom_call.1} parent=1 // pred_check_branch
      %41 = sbr.rel (0) target = $region17
    $region16: #{tpu_custom_call.1} parent=1 // pred_region
      %43 = vsyncadd [#allocation6], 0
      %s44 = sshll.u32 %s3, 4
      %s45 = int_to_ptr.hbm [resolvable:$true] %s44
      %s46 = sshll.u32 [#allocation7], 4
      %s47 = int_to_ptr.vmem [resolvable:$true] %s46
      %52 = dma.hbm_to_vmem [thread:$0]  %s45, 2048, %s47, [#allocation6], 128, 128, 8
    $region17: #{tpu_custom_call.1} parent=1 // pred_fallthru
      _
    // Predicated region
    $region18: #{tpu_custom_call.1} parent=1 // pred_check
      _
    $region19: #{tpu_custom_call.1} parent=1 // pred_check_branch
      %54 = sbr.rel (0) target = $region21
    $region20: #{tpu_custom_call.1} parent=1 // pred_region
      _
    $region21: #{tpu_custom_call.1} parent=1 // pred_fallthru
      _
    // Predicated region
    $region22: #{tpu_custom_call.1} parent=1 // pred_check
      _
    $region23: #{tpu_custom_call.1} parent=1 // pred_check_branch
      %56 = sbr.rel (0) target = $region25
    $region24: #{tpu_custom_call.1} parent=1 // pred_region
      %58 = vsyncadd [#allocation9], 0
      %s59 = sshll.u32 %s5, 4
      %s60 = int_to_ptr.hbm [resolvable:$true] %s59
      %s61 = sshll.u32 [#allocation8], 4
      %s62 = int_to_ptr.vmem [resolvable:$true] %s61
      %67 = dma.hbm_to_vmem [thread:$0]  %s60, 2048, %s62, [#allocation9], 128, 128, 8
    $region25: #{tpu_custom_call.1} parent=1 // pred_fallthru
      _
    // Predicated region
    $region26: #{tpu_custom_call.1} parent=1 // pred_check
      _
    $region27: #{tpu_custom_call.1} parent=1 // pred_check_branch
      %69 = sbr.rel (0) target = $region29
    $region28: #{tpu_custom_call.1} parent=1 // pred_region
      _
    $region29: #{tpu_custom_call.1} parent=1 // pred_fallthru
      _
    // Predicated region
    $region30: #{tpu_custom_call.1} parent=1 // pred_check
      _
    $region31: #{tpu_custom_call.1} parent=1 // pred_check_branch
      %71 = sbr.rel (0) target = $region33
    $region32: #{tpu_custom_call.1} parent=1 // pred_region
      %73 = dma.done [#allocation3], 128
    $region33: #{tpu_custom_call.1} parent=1 // pred_fallthru
      _
    // Predicated region
    $region34: #{tpu_custom_call.1} parent=1 // pred_check
      _
    $region35: #{tpu_custom_call.1} parent=1 // pred_check_branch
      %75 = sbr.rel (0) target = $region37
    $region36: #{tpu_custom_call.1} parent=1 // pred_region
      %77 = dma.done [#allocation6], 64
    $region37: #{tpu_custom_call.1} parent=1 // pred_fallthru
      _
    // Predicated region
    $region38: #{tpu_custom_call.1} parent=1 // pred_check
      _
    $region39: #{tpu_custom_call.1} parent=1 // pred_check_branch
      %79 = sbr.rel (0) target = $region41
    $region40: #{tpu_custom_call.1} parent=1 // pred_region
      %81 = dma.done [#allocation6], 2048
    $region41: #{tpu_custom_call.1} parent=1 // pred_fallthru
      _
    // Predicated region
    $region42: #{tpu_custom_call.1} parent=1 // pred_check
      _
    $region43: #{tpu_custom_call.1} parent=1 // pred_check_branch
      %83 = sbr.rel (0) target = $region45
    $region44: #{tpu_custom_call.1} parent=1 // pred_region
      %85 = dma.done [#allocation9], 2048
    $region45: #{tpu_custom_call.1} parent=1 // pred_fallthru
      _
    %v86 = vld [vmem:[#allocation5] sm:$0xf]
    %v87 = vld [vmem:[%s2] sm:$0x1]
    %v88 = vld [vmem:[#allocation7] sm:$0xff]
    %v89 = vld [vmem:[#allocation7 + $0x8] sm:$0xff]
    %v90 = vld [vmem:[#allocation7 + $0x10] sm:$0xff]
    %v91 = vld [vmem:[#allocation7 + $0x18] sm:$0xff]
    %v92 = vld [vmem:[#allocation7 + $0x20] sm:$0xff]
    %v93 = vld [vmem:[#allocation7 + $0x28] sm:$0xff]
    %v94 = vld [vmem:[#allocation7 + $0x30] sm:$0xff]
    %v95 = vld [vmem:[#allocation7 + $0x38] sm:$0xff]
    %v96 = vld [vmem:[#allocation7 + $0x40] sm:$0xff]
    %v97 = vld [vmem:[#allocation7 + $0x48] sm:$0xff]
    %v98 = vld [vmem:[#allocation7 + $0x50] sm:$0xff]
    %v99 = vld [vmem:[#allocation7 + $0x58] sm:$0xff]
    %v100 = vld [vmem:[#allocation7 + $0x60] sm:$0xff]
    %v101 = vld [vmem:[#allocation7 + $0x68] sm:$0xff]
    %v102 = vld [vmem:[#allocation7 + $0x70] sm:$0xff]
    %v103 = vld [vmem:[#allocation7 + $0x78] sm:$0xff]
    %v104 = vld [vmem:[%s4] sm:$0x1]
    %v105 = vld [vmem:[#allocation8] sm:$0xff]
    %v106 = vld [vmem:[#allocation8 + $0x8] sm:$0xff]
    %v107 = vld [vmem:[#allocation8 + $0x10] sm:$0xff]
    %v108 = vld [vmem:[#allocation8 + $0x18] sm:$0xff]
    %v109 = vld [vmem:[#allocation8 + $0x20] sm:$0xff]
    %v110 = vld [vmem:[#allocation8 + $0x28] sm:$0xff]
    %v111 = vld [vmem:[#allocation8 + $0x30] sm:$0xff]
    %v112 = vld [vmem:[#allocation8 + $0x38] sm:$0xff]
    %v113 = vld [vmem:[#allocation8 + $0x40] sm:$0xff]
    %v114 = vld [vmem:[#allocation8 + $0x48] sm:$0xff]
    %v115 = vld [vmem:[#allocation8 + $0x50] sm:$0xff]
    %v116 = vld [vmem:[#allocation8 + $0x58] sm:$0xff]
    %v117 = vld [vmem:[#allocation8 + $0x60] sm:$0xff]
    %v118 = vld [vmem:[#allocation8 + $0x68] sm:$0xff]
    %v119 = vld [vmem:[#allocation8 + $0x70] sm:$0xff]
    %v120 = vld [vmem:[#allocation8 + $0x78] sm:$0xff]
    %v121 = vld [vmem:[%s6] sm:$0x1]
    %v122 = vld [vmem:[#allocation2] sm:$0xff]
    %vm123 = vcmp.ne.f32.partialorder %v122, %v122
    %v124 = vsel %vm123, 0.0, %v122
    %vm125 = vcmp.eq.f32.partialorder %v124, inf
    %v126 = vsel %vm125, 3.4028235e+38, %v124
    %vm127 = vcmp.eq.f32.partialorder %v126, -inf
    %v128 = vsel %vm127, -3.4028235e+38, %v126
    %v130 = vperm.slane %v87, 0
    %vm132 = vcmask 31744
    %v134 = vsel %vm132, %v128, 0
    %vm136 = vcmask 1043456
    %v138 = vsel %vm136, %v86, 0
    %140 = vmatpush.msra.mxu0 0.0
    %141 = vmatpush.msra.mxu0 0.0
    %142 = vmatpush.msra.mxu0 0.0
    %143 = vmatpush.msra.mxu0 0.0
    %144 = vmatpush.msra.mxu0 0.0
    %145 = vmatpush.msra.mxu0 0.0
    %146 = vmatpush.msra.mxu0 0.0
    %147 = vmatpush.msra.mxu0 0.0
    %148 = vmatpush.msra.mxu0 0.0
    %149 = vmatpush.msra.mxu0 0.0
    %150 = vmatpush.msra.mxu0 0.0
    %151 = vmatpush.msra.mxu0 0.0
    %152 = vmatpush.msra.mxu0 0.0
    %153 = vmatpush.msra.mxu0 0.0
    %154 = vmatpush.msra.mxu0 0.0
    %155 = vmatpush.msra.mxu0 %v138
    %156 = vmatmul.f32.gmra.mxu0 %v134
    %v157 = vpop.f32.mrf.mxu0
    %v158 = vadd.f32 %v130, %v157
    %159 = vdwg.mxu0
    %v160 = vmax.f32 %v158, 0.0
    %v162 = vperm.slane %v104, 0
    %164 = vmatpush.msra.mxu0 %v103
    %165 = vmatpush.msra.mxu0 %v102
    %166 = vmatpush.msra.mxu0 %v101
    %167 = vmatpush.msra.mxu0 %v100
    %168 = vmatpush.msra.mxu0 %v99
    %169 = vmatpush.msra.mxu0 %v98
    %170 = vmatpush.msra.mxu0 %v97
    %171 = vmatpush.msra.mxu0 %v96
    %172 = vmatpush.msra.mxu0 %v95
    %173 = vmatpush.msra.mxu0 %v94
    %174 = vmatpush.msra.mxu0 %v93
    %175 = vmatpush.msra.mxu0 %v92
    %176 = vmatpush.msra.mxu0 %v91
    %177 = vmatpush.msra.mxu0 %v90
    %178 = vmatpush.msra.mxu0 %v89
    %179 = vmatpush.msra.mxu0 %v88
    %180 = vmatmul.f32.gmra.mxu0 %v160
    %v181 = vpop.f32.mrf.mxu0
    %v182 = vadd.f32 %v162, %v181
    %183 = vdwg.mxu0
    %v184 = vmax.f32 %v182, 0.0
    %185 = vrot.lane.b32.xlu0 %v128, 124
    %v186 = vpop.permute.xlu0 %185
    %v187 = vsel %vm132, %v186, 0
    %189 = vmatpush.msra.mxu0 0.0
    %190 = vmatpush.msra.mxu0 0.0
    %191 = vmatpush.msra.mxu0 0.0
    %192 = vmatpush.msra.mxu0 0.0
    %193 = vmatpush.msra.mxu0 0.0
    %194 = vmatpush.msra.mxu0 0.0
    %195 = vmatpush.msra.mxu0 0.0
    %196 = vmatpush.msra.mxu0 0.0
    %197 = vmatpush.msra.mxu0 0.0
    %198 = vmatpush.msra.mxu0 0.0
    %199 = vmatpush.msra.mxu0 0.0
    %200 = vmatpush.msra.mxu0 0.0
    %201 = vmatpush.msra.mxu0 0.0
    %202 = vmatpush.msra.mxu0 0.0
    %203 = vmatpush.msra.mxu0 0.0
    %204 = vmatpush.msra.mxu0 %v138
    %205 = vmatmul.f32.gmra.mxu0 %v187
    %v206 = vpop.f32.mrf.mxu0
    %v207 = vadd.f32 %v130, %v206
    %208 = vdwg.mxu0
    %v209 = vmax.f32 %v207, 0.0
    %210 = vmatpush.msra.mxu0 %v103
    %211 = vmatpush.msra.mxu0 %v102
    %212 = vmatpush.msra.mxu0 %v101
    %213 = vmatpush.msra.mxu0 %v100
    %214 = vmatpush.msra.mxu0 %v99
    %215 = vmatpush.msra.mxu0 %v98
    %216 = vmatpush.msra.mxu0 %v97
    %217 = vmatpush.msra.mxu0 %v96
    %218 = vmatpush.msra.mxu0 %v95
    %219 = vmatpush.msra.mxu0 %v94
    %220 = vmatpush.msra.mxu0 %v93
    %221 = vmatpush.msra.mxu0 %v92
    %222 = vmatpush.msra.mxu0 %v91
    %223 = vmatpush.msra.mxu0 %v90
    %224 = vmatpush.msra.mxu0 %v89
    %225 = vmatpush.msra.mxu0 %v88
    %226 = vmatmul.f32.gmra.mxu0 %v209
    %v227 = vpop.f32.mrf.mxu0
    %v228 = vadd.f32 %v162, %v227
    %229 = vdwg.mxu0
    %v230 = vmax.f32 %v228, 0.0
    %231 = vmatpush.msra.mxu0 %v120
    %232 = vmatpush.msra.mxu0 %v119
    %233 = vmatpush.msra.mxu0 %v118
    %234 = vmatpush.msra.mxu0 %v117
    %235 = vmatpush.msra.mxu0 %v116
    %236 = vmatpush.msra.mxu0 %v115
    %237 = vmatpush.msra.mxu0 %v114
    %238 = vmatpush.msra.mxu0 %v113
    %239 = vmatpush.msra.mxu0 %v112
    %240 = vmatpush.msra.mxu0 %v111
    %241 = vmatpush.msra.mxu0 %v110
    %242 = vmatpush.msra.mxu0 %v109
    %243 = vmatpush.msra.mxu0 %v108
    %244 = vmatpush.msra.mxu0 %v107
    %245 = vmatpush.msra.mxu0 %v106
    %246 = vmatpush.msra.mxu0 %v105
    %247 = vmatmul.f32.gmra.mxu0 %v230
    %v248 = vpop.f32.mrf.mxu0
    %v249 = vadd.f32 0.0, %v248
    %250 = vdwg.mxu0
    %251 = vmatpush.msra.mxu0 %v120
    %252 = vmatpush.msra.mxu0 %v119
    %253 = vmatpush.msra.mxu0 %v118
    %254 = vmatpush.msra.mxu0 %v117
    %255 = vmatpush.msra.mxu0 %v116
    %256 = vmatpush.msra.mxu0 %v115
    %257 = vmatpush.msra.mxu0 %v114
    %258 = vmatpush.msra.mxu0 %v113
    %259 = vmatpush.msra.mxu0 %v112
    %260 = vmatpush.msra.mxu0 %v111
    %261 = vmatpush.msra.mxu0 %v110
    %262 = vmatpush.msra.mxu0 %v109
    %263 = vmatpush.msra.mxu0 %v108
    %264 = vmatpush.msra.mxu0 %v107
    %265 = vmatpush.msra.mxu0 %v106
    %266 = vmatpush.msra.mxu0 %v105
    %267 = vmatmul.f32.gmra.mxu0 %v184
    %v268 = vpop.f32.mrf.mxu0
    %v269 = vadd.f32 %v249, %v268
    %270 = vdwg.mxu0
    %v272 = vperm.slane %v121, 0
    %v274 = vadd.f32 %v269, %v272
    %275 = vst [vmem:[#allocation10] sm:$0xff] %v274
    // Predicated region
    $region46: #{tpu_custom_call.1} parent=1 // pred_check
      _
    $region47: #{tpu_custom_call.1} parent=1 // pred_check_branch
      %277 = sbr.rel (0) target = $region49
    $region48: #{tpu_custom_call.1} parent=1 // pred_region
      %279 = vsyncadd [#allocation4], 0
      %s281 = sshll.u32 [#allocation10], 4
      %s282 = int_to_ptr.vmem [resolvable:$true] %s281
      %s283 = sshll.u32 %s7, 4
      %s284 = int_to_ptr.hbm [resolvable:$true] %s283
      %286 = dma.vmem_to_hbm [thread:$0]  %s282, 128, %s284, [#allocation4]
    $region49: #{tpu_custom_call.1} parent=1 // pred_fallthru
      _
    // Predicated region
    $region50: #{tpu_custom_call.1} parent=1 // pred_check
      _
    $region51: #{tpu_custom_call.1} parent=1 // pred_check_branch
      %288 = sbr.rel (0) target = $region53
    $region52: #{tpu_custom_call.1} parent=1 // pred_region
      %290 = dma.done [#allocation4], 128
    $region53: #{tpu_custom_call.1} parent=1 // pred_fallthru
      _
    %291 = vsyncpa [#allocation3], 1
    %292 = vsyncpa [#allocation6], 1
    %293 = vsyncpa [#allocation9], 1
    %294 = vsyncpa [#allocation4], 1

</llo_original>
